<compile_context>
chip_gen: v6e
topology: v6e:2x2x1
jax: 0.10.0
libtpu: 0.0.40
codegen_flags: <defaults>
</compile_context>

<pallas_src>
import functools

import jax
import jax.numpy as jnp
import numpy as np
from jax import lax
from jax.experimental import pallas as pl
from jax.experimental.pallas import tpu as pltpu

# ----------------------------- config ---------------------------------------
HIDDEN = 64                      # config.hidden_size
FFN = 128                        # config.moe_ffn_hidden_size
NUM_SECONDARY = 4                # config.moe_num_secondary_experts
SECONDARY_SIZE = FFN // NUM_SECONDARY   # config.moe_secondary_expert_size = 32
TOKENS = 16                      # "batch_size" rows fed to the MLP


# --------------------------- Pallas kernels ---------------------------------
def _hmlp_kernel(x_ref, ugw_ref, dw_ref, o_ref, *, ffn):
    """down( up(x) * relu(gate(x)) )  -- secondary experts disabled."""
    x = x_ref[...]
    # fused up+gate matmul: (T, H) @ (H, 2*FFN) -> (T, 256) lane-dense
    ug = jnp.dot(x, ugw_ref[...], preferred_element_type=jnp.float32)
    act = ug[:, :ffn] * jnp.maximum(ug[:, ffn:], 0.0)
    o_ref[...] = jnp.dot(act, dw_ref[...],
                         preferred_element_type=jnp.float32).astype(o_ref.dtype)


def _hmlp_kernel_secondary(x_ref, sgi_ref, ugw_ref, dw_ref, sgw_ref, o_ref,
                           *, ffn, sec_size):
    """Secondary experts enabled: per-group hard sigmoid gate on the FFN axis."""
    x = x_ref[...]
    ug = jnp.dot(x, ugw_ref[...], preferred_element_type=jnp.float32)
    act = ug[:, :ffn] * jnp.maximum(ug[:, ffn:], 0.0)

    # secondary gate: sigmoid(sec_in @ Wg.T) > 0.5, one bit per group
    logits = jnp.dot(sgi_ref[...], sgw_ref[...],
                     preferred_element_type=jnp.float32)          # (T, G)
    gate_on = (jax.nn.sigmoid(logits) > 0.5).astype(jnp.float32)  # (T, G)

    # expand group mask to lane-wise (T, FFN) mask without reshape/gather:
    num_groups = ffn // sec_size
    lane_grp = lax.broadcasted_iota(jnp.int32, act.shape, 1) // sec_size
    mask_full = jnp.zeros_like(act)
    for g in range(num_groups):                     # static unroll, tiny VPU work
        mask_full = mask_full + jnp.where(lane_grp == g, gate_on[:, g:g + 1], 0.0)
    act = act * mask_full

    o_ref[...] = jnp.dot(act, dw_ref[...],
                         preferred_element_type=jnp.float32).astype(o_ref.dtype)


# --------------------------- host-side wrapper -------------------------------
def prepare_params(raw):
    """One-time weight prep: nn.Linear (out, in) -> packed, (in, out) layout."""
    p = {
        # up columns first, gate columns second: (H, 2*FFN)
        'upgate_wt': jnp.concatenate([raw['up_w'].T, raw['gate_w'].T], axis=1),
        'down_wt': raw['down_w'].T,                                  # (FFN, H)
    }
    if 'secondary_gate_w' in raw:
        p['sec_gate_wt'] = raw['secondary_gate_w'].T                 # (H, G)
    return p


def hierarchical_mlp(hidden_states, params, *, secondary_gate_input=None,
                     secondary_expert_size=None):
    """SmallthinkerHierarchicalMLP.forward as a single fused pallas_call."""
    T, H = hidden_states.shape
    ugw = params['upgate_wt']
    dw = params['down_wt']
    two_ffn = ugw.shape[1]
    ffn = two_ffn // 2

    # token tiling (trivially one step at this size; scales to longer inputs)
    tt = T if T <= 256 else 256
    assert T % tt == 0, "token count must be divisible by the token tile"
    grid = (T // tt,)

    if secondary_gate_input is not None:
        sgw = params['sec_gate_wt']
        n_sec = sgw.shape[1]
        return pl.pallas_call(
            functools.partial(_hmlp_kernel_secondary, ffn=ffn,
                              sec_size=secondary_expert_size),
            out_shape=jax.ShapeDtypeStruct((T, H), hidden_states.dtype),
            grid=grid,
            in_specs=[
                pl.BlockSpec((tt, H), lambda i: (i, 0)),        # hidden_states
                pl.BlockSpec((tt, H), lambda i: (i, 0)),        # secondary_gate_input
                pl.BlockSpec((H, two_ffn), lambda i: (0, 0)),   # packed up|gate
                pl.BlockSpec((ffn, H), lambda i: (0, 0)),       # down
                pl.BlockSpec((H, n_sec), lambda i: (0, 0)),     # secondary gate
            ],
            out_specs=pl.BlockSpec((tt, H), lambda i: (i, 0)),
            compiler_params=pltpu.CompilerParams(
                dimension_semantics=("parallel",)),
        )(hidden_states, secondary_gate_input, ugw, dw, sgw)

    return pl.pallas_call(
        functools.partial(_hmlp_kernel, ffn=ffn),
        out_shape=jax.ShapeDtypeStruct((T, H), hidden_states.dtype),
        grid=grid,
        in_specs=[
            pl.BlockSpec((tt, H), lambda i: (i, 0)),
            pl.BlockSpec((H, two_ffn), lambda i: (0, 0)),
            pl.BlockSpec((ffn, H), lambda i: (0, 0)),
        ],
        out_specs=pl.BlockSpec((tt, H), lambda i: (i, 0)),
        compiler_params=pltpu.CompilerParams(
            dimension_semantics=("parallel",)),
    )(hidden_states, ugw, dw)


# --------------------------- pure-JAX reference -------------------------------
def reference_forward(secondary_gate_input, hidden_states, raw, *,
                      enable_secondary, sec_size):
    hp = lax.Precision.HIGHEST
    up = jnp.dot(hidden_states, raw['up_w'].T, precision=hp)
    gate = jnp.dot(hidden_states, raw['gate_w'].T, precision=hp)
    act = up * jnp.maximum(gate, 0.0)
    if enable_secondary:
        logits = jnp.dot(secondary_gate_input, raw['secondary_gate_w'].T,
                         precision=hp)
        mask = (jax.nn.sigmoid(logits) > 0.5).astype(act.dtype)       # (T, G)
        T, F = act.shape
        g = F // sec_size
        act = (act.reshape(T, g, sec_size) * mask[:, :, None]).reshape(T, F)
    return jnp.dot(act, raw['down_w'].T, precision=hp)


# ------------------------------- main ----------------------------------------
if __name__ == "__main__":
    key = jax.random.PRNGKey(0)
    ks = jax.random.split(key, 6)
    x = jax.random.normal(ks[0], (TOKENS, HIDDEN), jnp.float32)
    sec_in = jax.random.normal(ks[1], (TOKENS, HIDDEN), jnp.float32)
    raw = {
        'up_w': 0.08 * jax.random.normal(ks[2], (FFN, HIDDEN), jnp.float32),
        'gate_w': 0.08 * jax.random.normal(ks[3], (FFN, HIDDEN), jnp.float32),
        'down_w': 0.08 * jax.random.normal(ks[4], (HIDDEN, FFN), jnp.float32),
        'secondary_gate_w': 0.25 * jax.random.normal(
            ks[5], (NUM_SECONDARY, HIDDEN), jnp.float32),
    }
    params = prepare_params(raw)

    # secondary experts disabled (config.moe_enable_secondary_experts = False)
    out_plain = hierarchical_mlp(x, params)
    # secondary experts enabled
    out_sec = hierarchical_mlp(x, params, secondary_gate_input=sec_in,
                               secondary_expert_size=SECONDARY_SIZE)
    out_plain, out_sec = jax.block_until_ready((out_plain, out_sec))

    ref_plain = reference_forward(None, x, raw,
                                  enable_secondary=False, sec_size=None)
    ref_sec = reference_forward(sec_in, x, raw,
                                enable_secondary=True, sec_size=SECONDARY_SIZE)

    assert out_plain.shape == (TOKENS, HIDDEN)
    assert out_sec.shape == (TOKENS, HIDDEN)
    np.testing.assert_allclose(np.asarray(out_plain), np.asarray(ref_plain),
                               rtol=2e-3, atol=2e-3)
    np.testing.assert_allclose(np.asarray(out_sec), np.asarray(ref_sec),
                               rtol=2e-3, atol=2e-3)
    print("KERNEL_OK")
</pallas_src>

<mosaic_0001>
module attributes {stable_mosaic.version = 11 : i64} {
  func.func @_hmlp_kernel(%arg0: i32, %arg1: memref<16x64xf32, #tpu.memory_space<vmem>>, %arg2: memref<64x256xf32, #tpu.memory_space<vmem>>, %arg3: memref<128x64xf32, #tpu.memory_space<vmem>>, %arg4: memref<16x64xf32, #tpu.memory_space<vmem>>) attributes {dimension_semantics = [#tpu.dimension_semantics<parallel>], iteration_bounds = array<i64: 1>, scalar_prefetch = 0 : i64, scratch_operands = 0 : i64, tpu.core_type = #tpu.core_type<tc>, window_params = [{transform_indices = @transform_0, window_bounds = array<i64: 16, 64>}, {pipeline_mode = #tpu.pipeline_mode<synchronous>, transform_indices = @transform_1, window_bounds = array<i64: 64, 256>}, {pipeline_mode = #tpu.pipeline_mode<synchronous>, transform_indices = @transform_2, window_bounds = array<i64: 128, 64>}, {transform_indices = @transform_3, window_bounds = array<i64: 16, 64>}]} {
    %c0 = arith.constant 0 : index
    %c0_0 = arith.constant 0 : index
    %0 = vector.load %arg1[%c0, %c0_0] : memref<16x64xf32, #tpu.memory_space<vmem>>, vector<16x64xf32>
    %c0_1 = arith.constant 0 : index
    %c0_2 = arith.constant 0 : index
    %1 = vector.load %arg2[%c0_1, %c0_2] : memref<64x256xf32, #tpu.memory_space<vmem>>, vector<64x256xf32>
    %cst = arith.constant dense<0.000000e+00> : vector<16x256xf32>
    %2 = tpu.matmul %0, %1, %cst {dimension_numbers = #tpu.dot_dimension_numbers<[1], [0], [0], [1], [0, 0, 1, 1], [], []>} : vector<16x64xf32>, vector<64x256xf32>, vector<16x256xf32> -> vector<16x256xf32>
    %3 = vector.extract_strided_slice %2 {offsets = [0, 0], sizes = [16, 128], strides = [1, 1]} : vector<16x256xf32> to vector<16x128xf32>
    %4 = vector.extract_strided_slice %2 {offsets = [0, 128], sizes = [16, 128], strides = [1, 1]} : vector<16x256xf32> to vector<16x128xf32>
    %cst_3 = arith.constant 0.000000e+00 : f32
    %5 = vector.broadcast %cst_3 : f32 to vector<16x128xf32>
    %6 = arith.maximumf %4, %5 : vector<16x128xf32>
    %7 = arith.mulf %3, %6 : vector<16x128xf32>
    %c0_4 = arith.constant 0 : index
    %c0_5 = arith.constant 0 : index
    %8 = vector.load %arg3[%c0_4, %c0_5] : memref<128x64xf32, #tpu.memory_space<vmem>>, vector<128x64xf32>
    %cst_6 = arith.constant dense<0.000000e+00> : vector<16x64xf32>
    %9 = tpu.matmul %7, %8, %cst_6 {dimension_numbers = #tpu.dot_dimension_numbers<[1], [0], [0], [1], [0, 0, 1, 1], [], []>} : vector<16x128xf32>, vector<128x64xf32>, vector<16x64xf32> -> vector<16x64xf32>
    %c0_7 = arith.constant 0 : index
    %c0_8 = arith.constant 0 : index
    %10 = vector.load %arg4[%c0_7, %c0_8] : memref<16x64xf32, #tpu.memory_space<vmem>>, vector<16x64xf32>
    tpu.vector_store %arg4[%c0_7, %c0_8], %9 {strides = array<i32>} : memref<16x64xf32, #tpu.memory_space<vmem>>, vector<16x64xf32>,
    return
  }
  func.func @transform_0(%arg0: i32) -> (i32, i32) {
    %c0_i32 = arith.constant 0 : i32
    %c0_i32_0 = arith.constant 0 : i32
    return %arg0, %c0_i32 : i32, i32
  }
  func.func @transform_1(%arg0: i32) -> (i32, i32) {
    %c0_i32 = arith.constant 0 : i32
    %c0_i32_0 = arith.constant 0 : i32
    %c0_i32_1 = arith.constant 0 : i32
    return %c0_i32, %c0_i32_0 : i32, i32
  }
  func.func @transform_2(%arg0: i32) -> (i32, i32) {
    %c0_i32 = arith.constant 0 : i32
    %c0_i32_0 = arith.constant 0 : i32
    %c0_i32_1 = arith.constant 0 : i32
    return %c0_i32, %c0_i32_0 : i32, i32
  }
  func.func @transform_3(%arg0: i32) -> (i32, i32) {
    %c0_i32 = arith.constant 0 : i32
    %c0_i32_0 = arith.constant 0 : i32
    return %arg0, %c0_i32 : i32, i32
  }
}

</mosaic_0001>

<llo_original>
// kernel: tpu_custom_call.1
$region0: #{tpu_custom_call.1}
  #allocation0 [shape = 'u32[]', space=smem, size = 0x4, offset = 0x4, fixed_abs, tag = 'smem constant byte address 0x4 - core index']
  #allocation1 [shape = 'u32[144,128]{1,0:T(1,128)}', space=vmem, size = 0x12000, scoped, tag = 'internal scratch']
  %s0 = inlined_call_operand.vmem [shape: f32[16,64], index: 0, kind: input, shape index: {}]
  %s1 = inlined_call_operand.vmem [shape: f32[64,256], index: 1, kind: input, shape index: {}]
  %s2 = inlined_call_operand.vmem [shape: f32[128,64], index: 2, kind: input, shape index: {}]
  %s3 = inlined_call_operand.hbm [shape: f32[16,64], index: 3, kind: output, shape index: {}]
  %s4 = sld [smem:[#allocation0]]
  $region22: #{tpu_custom_call.1} parent=0
    _
  %s6 = ssub.s32 1, %s4
  %s7 = scalar_select 0, %s6, %s4
  $region1: #{tpu_custom_call.1} parent=0
    #allocation2 [shape = 'u8[8192]{0}', space=vmem, size = 0x2000, scoped, tag = 'output window, operand 0, single buffered']
    #allocation3 [shape = 's32[1]{0}', space=sflag, size = 0x4, scoped, tag = 'scoped memory for tpu_custom_call.1']
    %8 = vsyncpa [#allocation3], 0
    // Predicated region
    $region2: #{tpu_custom_call.1} parent=1 // pred_check
      _
    $region3: #{tpu_custom_call.1} parent=1 // pred_check_branch
      %10 = sbr.rel (0) target = $region5
    $region4: #{tpu_custom_call.1} parent=1 // pred_region
      _
    $region5: #{tpu_custom_call.1} parent=1 // pred_fallthru
      _
    // Predicated region
    $region6: #{tpu_custom_call.1} parent=1 // pred_check
      _
    $region7: #{tpu_custom_call.1} parent=1 // pred_check_branch
      %12 = sbr.rel (0) target = $region9
    $region8: #{tpu_custom_call.1} parent=1 // pred_region
      _
    $region9: #{tpu_custom_call.1} parent=1 // pred_fallthru
      _
    // Predicated region
    $region10: #{tpu_custom_call.1} parent=1 // pred_check
      _
    $region11: #{tpu_custom_call.1} parent=1 // pred_check_branch
      %14 = sbr.rel (0) target = $region13
    $region12: #{tpu_custom_call.1} parent=1 // pred_region
      _
    $region13: #{tpu_custom_call.1} parent=1 // pred_fallthru
      _
    %v15 = vld [vmem:[%s0] sm:$0xff]
    %v16 = vld [vmem:[%s0 + $0x8] sm:$0xff]
    %v17 = vld [vmem:[%s1] sm:$0xff]
    %v18 = vld [vmem:[%s1 + $0x8] sm:$0xff]
    %v19 = vld [vmem:[%s1 + $0x10] sm:$0xff]
    %v20 = vld [vmem:[%s1 + $0x18] sm:$0xff]
    %v21 = vld [vmem:[%s1 + $0x20] sm:$0xff]
    %v22 = vld [vmem:[%s1 + $0x28] sm:$0xff]
    %v23 = vld [vmem:[%s1 + $0x30] sm:$0xff]
    %v24 = vld [vmem:[%s1 + $0x38] sm:$0xff]
    %v25 = vld [vmem:[%s1 + $0x40] sm:$0xff]
    %v26 = vld [vmem:[%s1 + $0x48] sm:$0xff]
    %v27 = vld [vmem:[%s1 + $0x50] sm:$0xff]
    %v28 = vld [vmem:[%s1 + $0x58] sm:$0xff]
    %v29 = vld [vmem:[%s1 + $0x60] sm:$0xff]
    %v30 = vld [vmem:[%s1 + $0x68] sm:$0xff]
    %v31 = vld [vmem:[%s1 + $0x70] sm:$0xff]
    %v32 = vld [vmem:[%s1 + $0x78] sm:$0xff]
    %vm33 = vcmask 523264
    %v35 = vsel %vm33, %v15, 0
    %v38 = vsel %vm33, %v16, 0
    %40 = vmatprep.subr.mxu0 0.0
    %41 = vmatpush1.msra.mxu0 0.0
    %42 = vmatprep.subr.mxu0 0.0
    %43 = vmatpush1.msra.mxu0 0.0
    %44 = vmatprep.subr.mxu0 0.0
    %45 = vmatpush1.msra.mxu0 0.0
    %46 = vmatprep.subr.mxu0 0.0
    %47 = vmatpush1.msra.mxu0 0.0
    %48 = vmatprep.subr.mxu0 0.0
    %49 = vmatpush1.msra.mxu0 0.0
    %50 = vmatprep.subr.mxu0 0.0
    %51 = vmatpush1.msra.mxu0 0.0
    %52 = vmatprep.subr.mxu0 0.0
    %53 = vmatpush1.msra.mxu0 0.0
    %54 = vmatprep.subr.mxu0 0.0
    %55 = vmatpush1.msra.mxu0 0.0
    %56 = vmatprep.subr.mxu0 %v32
    %57 = vmatpush1.msra.mxu0 %v31
    %58 = vmatprep.subr.mxu0 %v30
    %59 = vmatpush1.msra.mxu0 %v29
    %60 = vmatprep.subr.mxu0 %v28
    %61 = vmatpush1.msra.mxu0 %v27
    %62 = vmatprep.subr.mxu0 %v26
    %63 = vmatpush1.msra.mxu0 %v25
    %64 = vmatprep.subr.mxu0 %v24
    %65 = vmatpush1.msra.mxu0 %v23
    %66 = vmatprep.subr.mxu0 %v22
    %67 = vmatpush1.msra.mxu0 %v21
    %68 = vmatprep.subr.mxu0 %v20
    %69 = vmatpush1.msra.mxu0 %v19
    %70 = vmatprep.subr.mxu0 %v18
    %71 = vmatpush1.msra.mxu0 %v17
    %72 = vmatprep.subr.mxu0 0.0
    %73 = vmatpush2.msra.mxu0 0.0
    %74 = vmatprep.subr.mxu0 0.0
    %75 = vmatpush2.msra.mxu0 0.0
    %76 = vmatprep.subr.mxu0 0.0
    %77 = vmatpush2.msra.mxu0 0.0
    %78 = vmatprep.subr.mxu0 0.0
    %79 = vmatpush2.msra.mxu0 0.0
    %80 = vmatprep.subr.mxu0 0.0
    %81 = vmatpush2.msra.mxu0 0.0
    %82 = vmatprep.subr.mxu0 0.0
    %83 = vmatpush2.msra.mxu0 0.0
    %84 = vmatprep.subr.mxu0 0.0
    %85 = vmatpush2.msra.mxu0 0.0
    %86 = vmatprep.subr.mxu0 0.0
    %87 = vmatpush2.msra.mxu0 0.0
    %88 = vmatprep.subr.mxu0 0.0
    %89 = vmatpush2.msra.mxu0 0.0
    %90 = vmatprep.subr.mxu0 0.0
    %91 = vmatpush2.msra.mxu0 0.0
    %92 = vmatprep.subr.mxu0 0.0
    %93 = vmatpush2.msra.mxu0 0.0
    %94 = vmatprep.subr.mxu0 0.0
    %95 = vmatpush2.msra.mxu0 0.0
    %96 = vmatprep.subr.mxu0 0.0
    %97 = vmatpush2.msra.mxu0 0.0
    %98 = vmatprep.subr.mxu0 0.0
    %99 = vmatpush2.msra.mxu0 0.0
    %100 = vmatprep.subr.mxu0 0.0
    %101 = vmatpush2.msra.mxu0 0.0
    %102 = vmatprep.subr.mxu0 0.0
    %103 = vmatpush2.msra.mxu0 0.0
    %104 = vmatprep.mubr.f32.mxu0 0.0
    %105 = vmatmul.mubr.f32.gmra.mxu0 %v35
    %v106 = vpop.f32.mrf.mxu0
    %v107 = vadd.f32 0.0, %v106
    %v108 = vpop.f32.mrf.mxu0
    %v109 = vadd.f32 0.0, %v108
    %110 = vmatprep.mubr.f32.mxu0 0.0
    %111 = vmatmul.mubr.f32.gmra.mxu0 %v38
    %v112 = vpop.f32.mrf.mxu0
    %v113 = vadd.f32 0.0, %v112
    %v114 = vpop.f32.mrf.mxu0
    %v115 = vadd.f32 0.0, %v114
    %116 = vdwg.mxu0
    %v117 = vmax.f32 %v109, 0.0
    %v118 = vmax.f32 %v115, 0.0
    %v119 = vmul.f32 %v107, %v117
    %v120 = vmul.f32 %v113, %v118
    %v121 = vld [vmem:[%s2] sm:$0xff]
    %v122 = vld [vmem:[%s2 + $0x8] sm:$0xff]
    %v123 = vld [vmem:[%s2 + $0x10] sm:$0xff]
    %v124 = vld [vmem:[%s2 + $0x18] sm:$0xff]
    %v125 = vld [vmem:[%s2 + $0x20] sm:$0xff]
    %v126 = vld [vmem:[%s2 + $0x28] sm:$0xff]
    %v127 = vld [vmem:[%s2 + $0x30] sm:$0xff]
    %v128 = vld [vmem:[%s2 + $0x38] sm:$0xff]
    %v129 = vld [vmem:[%s2 + $0x40] sm:$0xff]
    %v130 = vld [vmem:[%s2 + $0x48] sm:$0xff]
    %v131 = vld [vmem:[%s2 + $0x50] sm:$0xff]
    %v132 = vld [vmem:[%s2 + $0x58] sm:$0xff]
    %v133 = vld [vmem:[%s2 + $0x60] sm:$0xff]
    %v134 = vld [vmem:[%s2 + $0x68] sm:$0xff]
    %v135 = vld [vmem:[%s2 + $0x70] sm:$0xff]
    %v136 = vld [vmem:[%s2 + $0x78] sm:$0xff]
    %137 = vmatprep.subr.mxu0 0.0
    %138 = vmatpush1.msra.mxu0 %v136
    %139 = vmatprep.subr.mxu0 0.0
    %140 = vmatpush1.msra.mxu0 %v135
    %141 = vmatprep.subr.mxu0 0.0
    %142 = vmatpush1.msra.mxu0 %v134
    %143 = vmatprep.subr.mxu0 0.0
    %144 = vmatpush1.msra.mxu0 %v133
    %145 = vmatprep.subr.mxu0 0.0
    %146 = vmatpush1.msra.mxu0 %v132
    %147 = vmatprep.subr.mxu0 0.0
    %148 = vmatpush1.msra.mxu0 %v131
    %149 = vmatprep.subr.mxu0 0.0
    %150 = vmatpush1.msra.mxu0 %v130
    %151 = vmatprep.subr.mxu0 0.0
    %152 = vmatpush1.msra.mxu0 %v129
    %153 = vmatprep.subr.mxu0 0.0
    %154 = vmatpush1.msra.mxu0 %v128
    %155 = vmatprep.subr.mxu0 0.0
    %156 = vmatpush1.msra.mxu0 %v127
    %157 = vmatprep.subr.mxu0 0.0
    %158 = vmatpush1.msra.mxu0 %v126
    %159 = vmatprep.subr.mxu0 0.0
    %160 = vmatpush1.msra.mxu0 %v125
    %161 = vmatprep.subr.mxu0 0.0
    %162 = vmatpush1.msra.mxu0 %v124
    %163 = vmatprep.subr.mxu0 0.0
    %164 = vmatpush1.msra.mxu0 %v123
    %165 = vmatprep.subr.mxu0 0.0
    %166 = vmatpush1.msra.mxu0 %v122
    %167 = vmatprep.subr.mxu0 0.0
    %168 = vmatpush1.msra.mxu0 %v121
    %169 = vmatprep.subr.mxu0 0.0
    %170 = vmatpush2.msra.mxu0 0.0
    %171 = vmatprep.subr.mxu0 0.0
    %172 = vmatpush2.msra.mxu0 0.0
    %173 = vmatprep.subr.mxu0 0.0
    %174 = vmatpush2.msra.mxu0 0.0
    %175 = vmatprep.subr.mxu0 0.0
    %176 = vmatpush2.msra.mxu0 0.0
    %177 = vmatprep.subr.mxu0 0.0
    %178 = vmatpush2.msra.mxu0 0.0
    %179 = vmatprep.subr.mxu0 0.0
    %180 = vmatpush2.msra.mxu0 0.0
    %181 = vmatprep.subr.mxu0 0.0
    %182 = vmatpush2.msra.mxu0 0.0
    %183 = vmatprep.subr.mxu0 0.0
    %184 = vmatpush2.msra.mxu0 0.0
    %185 = vmatprep.subr.mxu0 0.0
    %186 = vmatpush2.msra.mxu0 0.0
    %187 = vmatprep.subr.mxu0 0.0
    %188 = vmatpush2.msra.mxu0 0.0
    %189 = vmatprep.subr.mxu0 0.0
    %190 = vmatpush2.msra.mxu0 0.0
    %191 = vmatprep.subr.mxu0 0.0
    %192 = vmatpush2.msra.mxu0 0.0
    %193 = vmatprep.subr.mxu0 0.0
    %194 = vmatpush2.msra.mxu0 0.0
    %195 = vmatprep.subr.mxu0 0.0
    %196 = vmatpush2.msra.mxu0 0.0
    %197 = vmatprep.subr.mxu0 0.0
    %198 = vmatpush2.msra.mxu0 0.0
    %199 = vmatprep.subr.mxu0 0.0
    %200 = vmatpush2.msra.mxu0 0.0
    %201 = vmatprep.mubr.f32.mxu0 0.0
    %202 = vmatmul.mubr.f32.gmra.mxu0 %v119
    %v203 = vpop.f32.mrf.mxu0
    %v204 = vadd.f32 0.0, %v203
    %v205 = vpop.f32.mrf.mxu0
    %206 = vmatprep.mubr.f32.mxu0 0.0
    %207 = vmatmul.mubr.f32.gmra.mxu0 %v120
    %v208 = vpop.f32.mrf.mxu0
    %v209 = vadd.f32 0.0, %v208
    %v210 = vpop.f32.mrf.mxu0
    %211 = vdwg.mxu0
    %212 = vst.msk [vmem:[#allocation2] sm:$0xff] %vm33, %v204
    %213 = vst.msk [vmem:[#allocation2 + $0x8] sm:$0xff] %vm33, %v209
    // Predicated region
    $region14: #{tpu_custom_call.1} parent=1 // pred_check
      _
    $region15: #{tpu_custom_call.1} parent=1 // pred_check_branch
      %215 = sbr.rel (0) target = $region17
    $region16: #{tpu_custom_call.1} parent=1 // pred_region
      %s217 = ssub.s32 256, 256
      %218 = vsyncadd [#allocation3], %s217
      %s219 = sshll.u32 [#allocation2], 4
      %s220 = int_to_ptr.vmem [resolvable:$true] %s219
      %225 = dma.vmem_to_hbm [thread:$0]  %s220, 256, %s3, [#allocation3], 128, 128, 8
    $region17: #{tpu_custom_call.1} parent=1 // pred_fallthru
      _
    // Predicated region
    $region18: #{tpu_custom_call.1} parent=1 // pred_check
      _
    $region19: #{tpu_custom_call.1} parent=1 // pred_check_branch
      %227 = sbr.rel (0) target = $region21
    $region20: #{tpu_custom_call.1} parent=1 // pred_region
      %228 = dma.done [#allocation3], 256
    $region21: #{tpu_custom_call.1} parent=1 // pred_fallthru
      _
    %229 = vsyncpa [#allocation3], 1

</llo_original>
